<compile_context>
chip_gen: v6e
topology: v6e:2x2x1
jax: 0.10.0
libtpu: 0.0.40
codegen_flags: <defaults>
</compile_context>

<pallas_src>
import functools
from typing import NamedTuple

import jax
import jax.numpy as jnp
from jax.experimental import pallas as pl
from jax.experimental.pallas import tpu as pltpu


def _round_up(a, b):
    return ((a + b - 1) // b) * b


def _divisors_aligned(total, unit):
    """Multiples of `unit` that divide `total`, descending. Requires total % unit == 0."""
    q = total // unit
    return [d * unit for d in range(q, 0, -1) if q % d == 0]


def _vmem_capacity_bytes():
    try:
        return int(pltpu.get_tpu_info().vmem_capacity_bytes)
    except Exception:
        return 64 << 20  # conservative fallback (v7x per-TC VMEM)


class FCParams(NamedTuple):
    w_t: jax.Array        # (Kp, Np) transposed + padded weight, K-major for the MXU
    b: jax.Array          # (1, Np) padded bias
    in_features: int
    out_features: int


def prepare_fc_params(weight, bias, dtype=None):
    """One-time parameter prep (outside the per-forward hot path).

    weight: (out_features, in_features)  -- PyTorch nn.Linear layout
    bias:   (out_features,)

    Transposes the weight to (K, N) so the kernel uses the standard MXU
    contraction, and pads K/N to multiples of 128 once so no per-call weight
    padding (HBM->HBM copy) is needed.
    """
    N, K = weight.shape
    assert bias.shape == (N,)
    if dtype is not None:
        weight = weight.astype(dtype)
        bias = bias.astype(dtype)
    Kp, Np = _round_up(K, 128), _round_up(N, 128)
    w_t = weight.T                               # (K, N)
    if (Kp, Np) != (K, N):
        w_t = jnp.pad(w_t, ((0, Kp - K), (0, Np - N)))
    b2 = bias.reshape(1, N)
    if Np != N:
        b2 = jnp.pad(b2, ((0, 0), (0, Np - N)))
    return FCParams(w_t=w_t, b=b2, in_features=K, out_features=N)


def _fc_kernel(x_ref, w_ref, b_ref, o_ref, *acc, relu, nk):
    """One grid step of y = x @ w + b (+ optional ReLU).

    Grid is (Mp//tm, Np//tn, Kp//tk), K innermost ("arbitrary").
    x_ref: (tm, tk); w_ref: (tk, tn) (pre-transposed); b_ref: (1, tn).
    If `acc` is empty (f32 output), accumulation happens directly in o_ref.
    """
    part = jnp.dot(x_ref[...], w_ref[...], preferred_element_type=jnp.float32)

    if nk == 1:  # single-K-step fast path: one fused write, no revisit
        y = part + b_ref[...].astype(jnp.float32)
        if relu:
            y = jnp.maximum(y, 0.0)
        o_ref[...] = y.astype(o_ref.dtype)
        return

    needs_store = bool(acc)
    acc_ref = acc[0] if acc else o_ref
    k = pl.program_id(2)

    @pl.when(k == 0)
    def _():  # fold bias into the accumulator init (no zero-fill pass)
        acc_ref[...] = part + b_ref[...].astype(jnp.float32)

    @pl.when(k != 0)
    def _():
        acc_ref[...] += part

    if relu or needs_store:
        @pl.when(k == nk - 1)
        def _():
            y = acc_ref[...]
            if relu:
                y = jnp.maximum(y, 0.0)
            o_ref[...] = y.astype(o_ref.dtype)


def _choose_tiles(M, Np, Kp, in_bytes, out_bytes, budget, big_vmem):
    """Regime-aware, MXU-aligned, VMEM-budget-aware tile sizes.

    Small-M (<=256): weight-streaming regime -> fold full K when it fits,
    deeper weight buffering. Large-M: big output tiles (high arithmetic
    intensity) with tk ~512.
    """
    small_m = M <= 256
    if small_m:
        tm = min(_round_up(M, 8), 256)
        tn_cap = 1024 if big_vmem else 512
        tk_cap = Kp                      # try single-K-step (no accumulator revisits)
        w_bufs = 3                       # deeper weight streaming pipeline
    else:
        tm = min(_round_up(M, 8), 1024 if big_vmem else 512)
        tn_cap = 2048 if big_vmem else 1024
        tk_cap = 512
        w_bufs = 2

    tn_divs = _divisors_aligned(Np, 128)
    tk_divs = _divisors_aligned(Kp, 128)
    tn = next((d for d in tn_divs if d <= tn_cap), 128)
    tk = next((d for d in tk_divs if d <= tk_cap), 128)

    def fits(tm_, tn_, tk_):
        needs_acc = (out_bytes != 4) and (tk_ < Kp)
        vmem = (2 * tm_ * tk_ * in_bytes           # double-buffered x tiles
                + w_bufs * tk_ * tn_ * in_bytes    # buffered weight tiles
                + 2 * tm_ * tn_ * out_bytes        # double-buffered output tile
                + (tm_ * tn_ * 4 if needs_acc else 0)   # f32 accumulator scratch
                + 2 * tn_ * in_bytes)              # bias tile (negligible)
        return vmem <= budget

    def next_smaller(divs, cur):
        return next((d for d in divs if d < cur), None)

    # Shrink K first, then N, then M, until inside the VMEM budget.
    while not fits(tm, tn, tk):
        d = next_smaller(tk_divs, tk)
        if d is not None:
            tk = d
            continue
        d = next_smaller(tn_divs, tn)
        if d is not None:
            tn = d
            continue
        if tm > 8:
            tm = max(8, _round_up(tm // 2, 8))
            continue
        break
    return tm, tn, tk


def fc_forward(x, params, *, relu=True, tm=None, tn=None, tk=None):
    """Pallas equivalent of FC.forward: y = relu(x @ weight.T + bias).

    x: (M, in_features); params from prepare_fc_params (weight pre-transposed
    and pre-padded). Only x is padded per call; result is sliced back.
    """
    M, K = x.shape
    assert K == params.in_features, "in_features mismatch"
    N = params.out_features
    Kp, Np = params.w_t.shape
    out_dtype = x.dtype
    in_bytes = jnp.dtype(x.dtype).itemsize
    out_bytes = jnp.dtype(out_dtype).itemsize

    vmem_cap = _vmem_capacity_bytes()
    vmem_limit = (vmem_cap * 3) // 4       # ~96 MiB on v5e/v6e, ~48 MiB on v7x
    budget = (vmem_limit * 4) // 5         # headroom for compiler temporaries
    big_vmem = vmem_cap >= (96 << 20)

    user_tiled = (tm is not None) or (tn is not None) or (tk is not None)
    atm, atn, atk = _choose_tiles(M, Np, Kp, in_bytes, out_bytes, budget, big_vmem)
    tm = atm if tm is None else tm
    tn = atn if tn is None else tn
    tk = atk if tk is None else tk

    # v7x has 2 TensorCores sharded over "parallel" grid axes: if the whole
    # problem would be a single (i, j) block, split N so both cores get work
    # (costs only one extra grid step on single-core chips).
    if not user_tiled and (_round_up(M, tm) // tm) * (Np // tn) == 1:
        smaller = next((d for d in _divisors_aligned(Np, 128) if d < tn), None)
        if smaller is not None:
            tn = smaller

    if tm % 8 or tn % 128 or tk % 128 or Np % tn or Kp % tk:
        raise ValueError(f"invalid tiles tm={tm}, tn={tn}, tk={tk} for padded "
                         f"shapes Np={Np}, Kp={Kp} (need tm%8==0, tn/tk "
                         f"multiples of 128 dividing the padded dims)")

    Mp = _round_up(M, tm)
    if (Mp, Kp) != (M, K):     # only the small activation is padded per call
        x = jnp.pad(x, ((0, Mp - M), (0, Kp - K)))

    grid = (Mp // tm, Np // tn, Kp // tk)
    nk = grid[2]
    small_m = M <= 256

    # f32 output: accumulate directly into o_ref (saves tm*tn*4 bytes of VMEM).
    use_acc_scratch = (jnp.dtype(out_dtype) != jnp.float32) and nk > 1
    scratch = (pltpu.VMEM((tm, tn), jnp.float32),) if use_acc_scratch else ()

    # Deeper weight pipelining in the small-M weight-streaming regime.
    w_idx = lambda i, j, k: (k, j)
    w_spec = pl.BlockSpec((tk, tn), w_idx)
    if small_m and not user_tiled and grid[1] * nk >= 3:
        try:
            w_spec = pl.BlockSpec((tk, tn), w_idx, pipeline_mode=pl.Buffered(3))
        except (TypeError, AttributeError):
            pass  # older API: fall back to default double buffering

    kernel = functools.partial(_fc_kernel, relu=relu, nk=nk)
    cost = pl.CostEstimate(
        flops=2 * M * N * K,
        transcendentals=0,
        bytes_accessed=(M * K * in_bytes + N * K * in_bytes
                        + N * in_bytes + M * N * out_bytes),
    )

    out = pl.pallas_call(
        kernel,
        out_shape=jax.ShapeDtypeStruct((Mp, Np), out_dtype),
        grid_spec=pltpu.PrefetchScalarGridSpec(
            num_scalar_prefetch=0,
            grid=grid,
            in_specs=[
                pl.BlockSpec((tm, tk), lambda i, j, k: (i, k)),   # x tile
                w_spec,                                           # (K, N) weight tile
                pl.BlockSpec((1, tn), lambda i, j, k: (0, j)),    # bias tile
            ],
            out_specs=pl.BlockSpec((tm, tn), lambda i, j, k: (i, j)),
            scratch_shapes=scratch,
        ),
        compiler_params=pltpu.CompilerParams(
            dimension_semantics=("parallel", "parallel", "arbitrary"),
            vmem_limit_bytes=vmem_limit,
        ),
        cost_estimate=cost,
    )(x, params.w_t, params.b)

    if (Mp, Np) != (M, N):
        out = out[:M, :N]
    return out


if __name__ == "__main__":
    key = jax.random.PRNGKey(0)

    def init_fc(k, in_f, out_f, dtype=jnp.float32):
        kw, kb = jax.random.split(k)
        bound = 1.0 / (in_f ** 0.5)
        w = jax.random.uniform(kw, (out_f, in_f), minval=-bound, maxval=bound,
                               dtype=jnp.float32)
        b = jax.random.uniform(kb, (out_f,), minval=-bound, maxval=bound,
                               dtype=jnp.float32)
        return w.astype(dtype), b.astype(dtype)

    k1, k2, k3, kx = jax.random.split(key, 4)

    # 1) Small, unaligned FC (batch=8, in=32, out=64), f32 + ReLU, auto tiles.
    M, IN, OUT = 8, 32, 64
    w, b = init_fc(k1, IN, OUT)
    x = jax.random.normal(kx, (M, IN), dtype=jnp.float32)
    p = prepare_fc_params(w, b)
    y = jax.block_until_ready(fc_forward(x, p, relu=True))
    y_ref = jnp.maximum(x @ w.T + b, 0.0)
    assert y.shape == (M, OUT)
    assert jnp.allclose(y, y_ref, atol=1e-5, rtol=1e-5)

    # 2) Aligned FC, auto tiles (exercises the megacore N-split), f32, no ReLU.
    M2, IN2, OUT2 = 16, 256, 256
    w2, b2 = init_fc(k2, IN2, OUT2)
    x2 = jax.random.normal(kx, (M2, IN2), dtype=jnp.float32)
    p2 = prepare_fc_params(w2, b2)
    y2 = jax.block_until_ready(fc_forward(x2, p2, relu=False))
    y2_ref = x2 @ w2.T + b2
    assert jnp.allclose(y2, y2_ref, atol=1e-4, rtol=1e-4)

    # 3) Forced multi-step K reduction (nk=2), f32 -> direct o_ref accumulation.
    y3 = jax.block_until_ready(fc_forward(x2, p2, relu=True, tm=8, tn=128, tk=128))
    y3_ref = jnp.maximum(y2_ref, 0.0)
    assert jnp.allclose(y3, y3_ref, atol=1e-4, rtol=1e-4)

    # 4) bf16 path (f32 accumulator scratch), multi-step K, ReLU.
    w4, b4 = init_fc(k3, IN2, OUT2, dtype=jnp.bfloat16)
    x4 = x2.astype(jnp.bfloat16)
    p4 = prepare_fc_params(w4, b4)
    y4 = jax.block_until_ready(fc_forward(x4, p4, relu=True, tm=8, tn=128, tk=128))
    y4_ref = jnp.maximum(x4.astype(jnp.float32) @ w4.astype(jnp.float32).T
                         + b4.astype(jnp.float32), 0.0)
    assert jnp.allclose(y4.astype(jnp.float32), y4_ref, atol=2e-2, rtol=2e-2)

    print("KERNEL_OK")
</pallas_src>

<mosaic_0001>
module attributes {stable_mosaic.version = 11 : i64} {
  func.func @_fc_kernel(%arg0: i32, %arg1: i32, %arg2: i32, %arg3: memref<8x128xf32, #tpu.memory_space<vmem>>, %arg4: memref<128x128xf32, #tpu.memory_space<vmem>>, %arg5: memref<1x128xf32, #tpu.memory_space<vmem>>, %arg6: memref<8x128xf32, #tpu.memory_space<vmem>>) attributes {dimension_semantics = [#tpu.dimension_semantics<parallel>, #tpu.dimension_semantics<parallel>, #tpu.dimension_semantics<arbitrary>], iteration_bounds = array<i64: 1, 1, 1>, scalar_prefetch = 0 : i64, scratch_operands = 0 : i64, tpu.core_type = #tpu.core_type<tc>, window_params = [{transform_indices = @transform_0, window_bounds = array<i64: 8, 128>}, {transform_indices = @transform_1, window_bounds = array<i64: 128, 128>}, {transform_indices = @transform_2, window_bounds = array<i64: 1, 128>}, {transform_indices = @transform_3, window_bounds = array<i64: 8, 128>}]} {
    %c0 = arith.constant 0 : index
    %c0_0 = arith.constant 0 : index
    %0 = vector.load %arg3[%c0, %c0_0] : memref<8x128xf32, #tpu.memory_space<vmem>>, vector<8x128xf32>
    %c0_1 = arith.constant 0 : index
    %c0_2 = arith.constant 0 : index
    %1 = vector.load %arg4[%c0_1, %c0_2] : memref<128x128xf32, #tpu.memory_space<vmem>>, vector<128x128xf32>
    %cst = arith.constant dense<0.000000e+00> : vector<8x128xf32>
    %2 = tpu.matmul %0, %1, %cst {dimension_numbers = #tpu.dot_dimension_numbers<[1], [0], [0], [1], [0, 0, 1, 1], [], []>} : vector<8x128xf32>, vector<128x128xf32>, vector<8x128xf32> -> vector<8x128xf32>
    %c0_3 = arith.constant 0 : index
    %c0_4 = arith.constant 0 : index
    %3 = vector.load %arg5[%c0_3, %c0_4] : memref<1x128xf32, #tpu.memory_space<vmem>>, vector<1x128xf32>
    %4 = vector.broadcast %3 : vector<1x128xf32> to vector<8x128xf32>
    %5 = arith.addf %2, %4 : vector<8x128xf32>
    %cst_5 = arith.constant 0.000000e+00 : f32
    %6 = vector.broadcast %cst_5 : f32 to vector<8x128xf32>
    %7 = arith.maximumf %5, %6 : vector<8x128xf32>
    %c0_6 = arith.constant 0 : index
    %c0_7 = arith.constant 0 : index
    %8 = vector.load %arg6[%c0_6, %c0_7] : memref<8x128xf32, #tpu.memory_space<vmem>>, vector<8x128xf32>
    tpu.vector_store %arg6[%c0_6, %c0_7], %7 {strides = array<i32>} : memref<8x128xf32, #tpu.memory_space<vmem>>, vector<8x128xf32>,
    return
  }
  func.func @transform_0(%arg0: i32, %arg1: i32, %arg2: i32) -> (i32, i32) {
    %c0_i32 = arith.constant 0 : i32
    return %arg0, %arg2 : i32, i32
  }
  func.func @transform_1(%arg0: i32, %arg1: i32, %arg2: i32) -> (i32, i32) {
    %c0_i32 = arith.constant 0 : i32
    return %arg2, %arg1 : i32, i32
  }
  func.func @transform_2(%arg0: i32, %arg1: i32, %arg2: i32) -> (i32, i32) {
    %c0_i32 = arith.constant 0 : i32
    %c0_i32_0 = arith.constant 0 : i32
    return %c0_i32, %arg1 : i32, i32
  }
  func.func @transform_3(%arg0: i32, %arg1: i32, %arg2: i32) -> (i32, i32) {
    %c0_i32 = arith.constant 0 : i32
    return %arg0, %arg1 : i32, i32
  }
}

</mosaic_0001>

<llo_original>
// kernel: tpu_custom_call.1
$region0: #{tpu_custom_call.1}
  #allocation0 [shape = 'u32[]', space=smem, size = 0x4, offset = 0x4, fixed_abs, tag = 'smem constant byte address 0x4 - core index']
  #allocation1 [shape = 'u32[144,128]{1,0:T(1,128)}', space=vmem, size = 0x12000, scoped, tag = 'internal scratch']
  %s0 = inlined_call_operand.hbm [shape: f32[8,128], index: 0, kind: input, shape index: {}]
  %s1 = inlined_call_operand.hbm [shape: f32[128,128], index: 1, kind: input, shape index: {}]
  %s2 = inlined_call_operand.vmem [shape: f32[1,128], index: 2, kind: input, shape index: {}]
  %s3 = inlined_call_operand.hbm [shape: f32[8,128], index: 3, kind: output, shape index: {}]
  %s4 = sld [smem:[#allocation0]]
  $region30: #{tpu_custom_call.1} parent=0
    _
  %s6 = ssub.s32 1, %s4
  %s7 = scalar_select 0, %s6, %s4
  $region1: #{tpu_custom_call.1} parent=0
    #allocation2 [shape = 'u8[4096]{0}', space=vmem, size = 0x1000, scoped, tag = 'input window, operand 0, single buffered']
    #allocation3 [shape = 's32[1]{0}', space=sflag, size = 0x4, scoped, tag = 'scoped memory for tpu_custom_call.1']
    #allocation4 [shape = 's32[1]{0}', space=sflag, size = 0x4, scoped, tag = 'scoped memory for tpu_custom_call.1']
    #allocation5 [shape = 'u8[65536]{0}', space=vmem, size = 0x10000, scoped, tag = 'input window, operand 1, single buffered']
    #allocation6 [shape = 's32[1]{0}', space=sflag, size = 0x4, scoped, tag = 'scoped memory for tpu_custom_call.1']
    #allocation7 [shape = 'u8[4096]{0}', space=vmem, size = 0x1000, scoped, tag = 'output window, operand 0, single buffered']
    %8 = vsyncpa [#allocation3], 0
    %9 = vsyncpa [#allocation6], 0
    %10 = vsyncpa [#allocation4], 0
    // Predicated region
    $region2: #{tpu_custom_call.1} parent=1 // pred_check
      _
    $region3: #{tpu_custom_call.1} parent=1 // pred_check_branch
      %12 = sbr.rel (0) target = $region5
    $region4: #{tpu_custom_call.1} parent=1 // pred_region
      %s14 = ssub.s32 128, 128
      %15 = vsyncadd [#allocation3], %s14
      %s17 = sshll.u32 [#allocation2], 4
      %s18 = int_to_ptr.vmem [resolvable:$true] %s17
      %20 = dma.hbm_to_vmem [thread:$0]  %s0, 128, %s18, [#allocation3]
    $region5: #{tpu_custom_call.1} parent=1 // pred_fallthru
      _
    // Predicated region
    $region6: #{tpu_custom_call.1} parent=1 // pred_check
      _
    $region7: #{tpu_custom_call.1} parent=1 // pred_check_branch
      %22 = sbr.rel (0) target = $region9
    $region8: #{tpu_custom_call.1} parent=1 // pred_region
      %s24 = ssub.s32 2048, 2048
      %25 = vsyncadd [#allocation6], %s24
      %s26 = sshll.u32 [#allocation5], 4
      %s27 = int_to_ptr.vmem [resolvable:$true] %s26
      %32 = dma.hbm_to_vmem [thread:$0]  %s1, 2048, %s27, [#allocation6], 128, 128, 8
    $region9: #{tpu_custom_call.1} parent=1 // pred_fallthru
      _
    // Predicated region
    $region10: #{tpu_custom_call.1} parent=1 // pred_check
      _
    $region11: #{tpu_custom_call.1} parent=1 // pred_check_branch
      %34 = sbr.rel (0) target = $region13
    $region12: #{tpu_custom_call.1} parent=1 // pred_region
      _
    $region13: #{tpu_custom_call.1} parent=1 // pred_fallthru
      _
    // Predicated region
    $region14: #{tpu_custom_call.1} parent=1 // pred_check
      _
    $region15: #{tpu_custom_call.1} parent=1 // pred_check_branch
      %36 = sbr.rel (0) target = $region17
    $region16: #{tpu_custom_call.1} parent=1 // pred_region
      %37 = dma.done [#allocation3], 128
    $region17: #{tpu_custom_call.1} parent=1 // pred_fallthru
      _
    // Predicated region
    $region18: #{tpu_custom_call.1} parent=1 // pred_check
      _
    $region19: #{tpu_custom_call.1} parent=1 // pred_check_branch
      %39 = sbr.rel (0) target = $region21
    $region20: #{tpu_custom_call.1} parent=1 // pred_region
      %40 = dma.done [#allocation6], 2048
    $region21: #{tpu_custom_call.1} parent=1 // pred_fallthru
      _
    %v41 = vld [vmem:[#allocation2] sm:$0xff]
    %v42 = vld [vmem:[#allocation5] sm:$0xff]
    %v43 = vld [vmem:[#allocation5 + $0x8] sm:$0xff]
    %v44 = vld [vmem:[#allocation5 + $0x10] sm:$0xff]
    %v45 = vld [vmem:[#allocation5 + $0x18] sm:$0xff]
    %v46 = vld [vmem:[#allocation5 + $0x20] sm:$0xff]
    %v47 = vld [vmem:[#allocation5 + $0x28] sm:$0xff]
    %v48 = vld [vmem:[#allocation5 + $0x30] sm:$0xff]
    %v49 = vld [vmem:[#allocation5 + $0x38] sm:$0xff]
    %v50 = vld [vmem:[#allocation5 + $0x40] sm:$0xff]
    %v51 = vld [vmem:[#allocation5 + $0x48] sm:$0xff]
    %v52 = vld [vmem:[#allocation5 + $0x50] sm:$0xff]
    %v53 = vld [vmem:[#allocation5 + $0x58] sm:$0xff]
    %v54 = vld [vmem:[#allocation5 + $0x60] sm:$0xff]
    %v55 = vld [vmem:[#allocation5 + $0x68] sm:$0xff]
    %v56 = vld [vmem:[#allocation5 + $0x70] sm:$0xff]
    %v57 = vld [vmem:[#allocation5 + $0x78] sm:$0xff]
    %v58 = vld [vmem:[%s2] sm:$0x1]
    %v60 = vlaneseq
    %v61 = vshrl.u32 %v60, 7
    %v62 = vsub.s32 0, %v61
    %v63 = vrot.slane %v58, %v62
    %65 = vmatprep.subr.mxu0 0.0
    %66 = vmatpush1.msra.mxu0 %v57
    %67 = vmatprep.subr.mxu0 0.0
    %68 = vmatpush1.msra.mxu0 %v56
    %69 = vmatprep.subr.mxu0 0.0
    %70 = vmatpush1.msra.mxu0 %v55
    %71 = vmatprep.subr.mxu0 0.0
    %72 = vmatpush1.msra.mxu0 %v54
    %73 = vmatprep.subr.mxu0 0.0
    %74 = vmatpush1.msra.mxu0 %v53
    %75 = vmatprep.subr.mxu0 0.0
    %76 = vmatpush1.msra.mxu0 %v52
    %77 = vmatprep.subr.mxu0 0.0
    %78 = vmatpush1.msra.mxu0 %v51
    %79 = vmatprep.subr.mxu0 0.0
    %80 = vmatpush1.msra.mxu0 %v50
    %81 = vmatprep.subr.mxu0 0.0
    %82 = vmatpush1.msra.mxu0 %v49
    %83 = vmatprep.subr.mxu0 0.0
    %84 = vmatpush1.msra.mxu0 %v48
    %85 = vmatprep.subr.mxu0 0.0
    %86 = vmatpush1.msra.mxu0 %v47
    %87 = vmatprep.subr.mxu0 0.0
    %88 = vmatpush1.msra.mxu0 %v46
    %89 = vmatprep.subr.mxu0 0.0
    %90 = vmatpush1.msra.mxu0 %v45
    %91 = vmatprep.subr.mxu0 0.0
    %92 = vmatpush1.msra.mxu0 %v44
    %93 = vmatprep.subr.mxu0 0.0
    %94 = vmatpush1.msra.mxu0 %v43
    %95 = vmatprep.subr.mxu0 0.0
    %96 = vmatpush1.msra.mxu0 %v42
    %97 = vmatprep.subr.mxu0 0.0
    %98 = vmatpush2.msra.mxu0 0.0
    %99 = vmatprep.subr.mxu0 0.0
    %100 = vmatpush2.msra.mxu0 0.0
    %101 = vmatprep.subr.mxu0 0.0
    %102 = vmatpush2.msra.mxu0 0.0
    %103 = vmatprep.subr.mxu0 0.0
    %104 = vmatpush2.msra.mxu0 0.0
    %105 = vmatprep.subr.mxu0 0.0
    %106 = vmatpush2.msra.mxu0 0.0
    %107 = vmatprep.subr.mxu0 0.0
    %108 = vmatpush2.msra.mxu0 0.0
    %109 = vmatprep.subr.mxu0 0.0
    %110 = vmatpush2.msra.mxu0 0.0
    %111 = vmatprep.subr.mxu0 0.0
    %112 = vmatpush2.msra.mxu0 0.0
    %113 = vmatprep.subr.mxu0 0.0
    %114 = vmatpush2.msra.mxu0 0.0
    %115 = vmatprep.subr.mxu0 0.0
    %116 = vmatpush2.msra.mxu0 0.0
    %117 = vmatprep.subr.mxu0 0.0
    %118 = vmatpush2.msra.mxu0 0.0
    %119 = vmatprep.subr.mxu0 0.0
    %120 = vmatpush2.msra.mxu0 0.0
    %121 = vmatprep.subr.mxu0 0.0
    %122 = vmatpush2.msra.mxu0 0.0
    %123 = vmatprep.subr.mxu0 0.0
    %124 = vmatpush2.msra.mxu0 0.0
    %125 = vmatprep.subr.mxu0 0.0
    %126 = vmatpush2.msra.mxu0 0.0
    %127 = vmatprep.subr.mxu0 0.0
    %128 = vmatpush2.msra.mxu0 0.0
    %129 = vmatprep.mubr.f32.mxu0 0.0
    %130 = vmatmul.mubr.f32.gmra.mxu0 %v41
    %v131 = vpop.f32.mrf.mxu0
    %v132 = vadd.f32 %v63, %v131
    %v133 = vpop.f32.mrf.mxu0
    %134 = vdwg.mxu0
    %v135 = vmax.f32 %v132, 0.0
    %136 = vst [vmem:[#allocation7] sm:$0xff] %v135
    // Predicated region
    $region22: #{tpu_custom_call.1} parent=1 // pred_check
      _
    $region23: #{tpu_custom_call.1} parent=1 // pred_check_branch
      %138 = sbr.rel (0) target = $region25
    $region24: #{tpu_custom_call.1} parent=1 // pred_region
      %s140 = ssub.s32 128, 128
      %141 = vsyncadd [#allocation4], %s140
      %s143 = sshll.u32 [#allocation7], 4
      %s144 = int_to_ptr.vmem [resolvable:$true] %s143
      %146 = dma.vmem_to_hbm [thread:$0]  %s144, 128, %s3, [#allocation4]
    $region25: #{tpu_custom_call.1} parent=1 // pred_fallthru
      _
    // Predicated region
    $region26: #{tpu_custom_call.1} parent=1 // pred_check
      _
    $region27: #{tpu_custom_call.1} parent=1 // pred_check_branch
      %148 = sbr.rel (0) target = $region29
    $region28: #{tpu_custom_call.1} parent=1 // pred_region
      %149 = dma.done [#allocation4], 128
    $region29: #{tpu_custom_call.1} parent=1 // pred_fallthru
      _
    %150 = vsyncpa [#allocation3], 1
    %151 = vsyncpa [#allocation6], 1
    %152 = vsyncpa [#allocation4], 1

</llo_original>
